<compile_context>
chip_gen: v7x
topology: tpu7x:2x2x1
jax: 0.10.0
libtpu: 0.0.40
codegen_flags: <defaults>
</compile_context>

<pallas_src>
import functools

import jax
import jax.numpy as jnp
from jax.experimental import pallas as pl
from jax.experimental.pallas import tpu as pltpu


def _embed_gather_kernel(ids_ref, table_hbm, out_ref, sems, *,
                         tile_t, group, n_groups):
    """Gather `tile_t` embedding rows from HBM straight into the output tile.

    ids_ref:   SMEM (T_pad,) int32       -- scalar-prefetched flattened token ids
    table_hbm: ANY/HBM (V, H)            -- embedding table, gathered row-by-row
    out_ref:   VMEM (tile_t, H)          -- output tile for this grid step
    sems:      DMA semaphores (group,)   -- one slot per row position in a group
    """
    t = pl.program_id(0)
    tile_base = pl.multiple_of(t * tile_t, tile_t)

    # ---- Issue phase: push all tile_t row DMAs, no waits on this path. -------
    @pl.loop(0, n_groups)
    def _(g):
        gbase = pl.multiple_of(g * group, group)
        for j in range(group):           # statically unrolled descriptor setup
            r = gbase + j
            tok = ids_ref[tile_base + r]
            pltpu.make_async_copy(
                table_hbm.at[pl.ds(tok, 1), :],
                out_ref.at[pl.ds(r, 1), :],
                sems.at[j],
            ).start()

    # ---- Drain phase: one wait per slot retires that slot's n_groups rows. ---
    # Each slot j received exactly n_groups copies of shape (1, H); DMA
    # semaphores count bytes, so a single wait sized (n_groups, H) matches the
    # accumulated signal exactly.  All rows are complete before the body returns,
    # so the pipelined output writeback sees complete data.
    for s in range(group):
        pltpu.make_async_copy(
            table_hbm.at[pl.ds(0, n_groups), :],
            out_ref.at[pl.ds(0, n_groups), :],
            sems.at[s],
        ).wait()


def _round_up(x: int, m: int) -> int:
    return ((x + m - 1) // m) * m


def falcon_begin(
    input_ids: jax.Array,
    embedding_table: jax.Array,
    *,
    tile_t: int = 512,
    n_slots: int = 16,
) -> jax.Array:
    """Embedding lookup: [B, S] int ids -> [B, S, H] embeddings."""
    B, S = input_ids.shape
    V, H = embedding_table.shape
    T = B * S
    dtype = embedding_table.dtype
    itemsize = jnp.dtype(dtype).itemsize

    flat_ids = input_ids.reshape(T).astype(jnp.int32)

    # Generation-aware VMEM budget: 128 MiB on v5e/v6e, 64 MiB per TC on v7x.
    try:
        vmem_cap = int(pltpu.get_tpu_info().vmem_capacity_bytes)
    except Exception:
        vmem_cap = 64 << 20                       # conservative (v7x per-TC)
    vmem_budget = min((vmem_cap * 3) // 4, 100 << 20)

    # Token tile: multiple of the slot count (static inner unroll) and of the
    # sublane width, never larger than the padded token count, and small enough
    # that the double-buffered output tile fits the VMEM budget.
    n_slots = max(1, int(n_slots))
    group = n_slots
    tile_t = max(group, min(int(tile_t), _round_up(T, group)))
    tile_t = _round_up(tile_t, group)
    while tile_t > group and 2 * tile_t * H * itemsize + (4 << 20) > vmem_budget:
        tile_t = _round_up(max(tile_t // 2, group), group)
    n_groups = tile_t // group

    t_pad = _round_up(T, tile_t)
    if t_pad != T:
        # Pad with token 0 (always a valid row); padded rows are sliced off below.
        flat_ids = jnp.pad(flat_ids, (0, t_pad - T))
    num_tiles = t_pad // tile_t

    kernel = functools.partial(
        _embed_gather_kernel, tile_t=tile_t, group=group, n_groups=n_groups
    )

    tile_bytes = tile_t * H * itemsize
    vmem_limit = int(min(max(4 * tile_bytes, 32 << 20), vmem_budget))

    out_flat = pl.pallas_call(
        kernel,
        out_shape=jax.ShapeDtypeStruct((t_pad, H), dtype),
        grid_spec=pltpu.PrefetchScalarGridSpec(
            num_scalar_prefetch=1,                    # flat_ids -> SMEM
            grid=(num_tiles,),
            in_specs=[
                # Embedding table stays in HBM; rows are gathered by manual DMA.
                pl.BlockSpec(memory_space=pl.ANY),
            ],
            # One (tile_t, H) output block per grid step, written back as we go.
            out_specs=pl.BlockSpec((tile_t, H), lambda t, ids: (t, 0)),
            scratch_shapes=[pltpu.SemaphoreType.DMA((group,))],
        ),
        compiler_params=pltpu.CompilerParams(
            dimension_semantics=("parallel",),        # tiles are independent
            vmem_limit_bytes=vmem_limit,
        ),
        cost_estimate=pl.CostEstimate(
            flops=0,
            transcendentals=0,
            # table row reads + output writes + id reads
            bytes_accessed=2 * t_pad * H * itemsize + t_pad * 4,
        ),
    )(flat_ids, embedding_table)

    out = out_flat[:T] if t_pad != T else out_flat
    return out.reshape(B, S, H)


if __name__ == "__main__":
    # Small, Falcon-flavoured synthetic config.
    VOCAB = 256
    HIDDEN = 128
    BATCH, SEQ = 2, 8

    key = jax.random.PRNGKey(0)
    k_emb, k_ids = jax.random.split(key)

    # Deterministic parameter init (stand-in for nn.Embedding weights).
    embedding_table = (
        jax.random.normal(k_emb, (VOCAB, HIDDEN), dtype=jnp.float32) * 0.02
    )
    input_ids = jax.random.randint(k_ids, (BATCH, SEQ), 0, VOCAB, dtype=jnp.int32)

    out = falcon_begin(input_ids, embedding_table)
    out = jax.block_until_ready(out)

    # Reference check (plain JAX gather).
    ref = embedding_table[input_ids.reshape(-1)].reshape(BATCH, SEQ, HIDDEN)
    assert out.shape == (BATCH, SEQ, HIDDEN)
    assert out.dtype == jnp.float32
    assert jnp.allclose(out, ref), "Pallas embedding gather mismatch"

    print("KERNEL_OK")
</pallas_src>

<mosaic_0001>
module attributes {stable_mosaic.version = 11 : i64} {
  func.func @_embed_gather_kernel(%arg0: i32, %arg1: memref<16xi32, #tpu.memory_space<smem>>, %arg2: memref<256x128xf32, #tpu.memory_space<any>>, %arg3: memref<16x128xf32, #tpu.memory_space<vmem>>, %arg4: memref<16x!tpu.dma_semaphore, #tpu.memory_space<semaphore_mem>>) attributes {dimension_semantics = [#tpu.dimension_semantics<parallel>], iteration_bounds = array<i64: 1>, scalar_prefetch = 1 : i64, scratch_operands = 1 : i64, tpu.core_type = #tpu.core_type<tc>, window_params = [{}, {transform_indices = @transform_1, window_bounds = array<i64: 16, 128>}]} {
    %c16_i32 = arith.constant 16 : i32
    %0 = arith.muli %arg0, %c16_i32 : i32
    %1 = tpu.assume_multiple %0, 16 : i32
    %c0_i32 = arith.constant 0 : i32
    %c1_i32 = arith.constant 1 : i32
    %2 = arith.muli %c0_i32, %c1_i32 : i32
    %c0_i32_0 = arith.constant 0 : i32
    %3 = arith.addi %c0_i32_0, %2 : i32
    %c16_i32_1 = arith.constant 16 : i32
    %4 = arith.muli %3, %c16_i32_1 : i32
    %5 = tpu.assume_multiple %4, 16 : i32
    %c0_i32_2 = arith.constant 0 : i32
    %6 = arith.addi %5, %c0_i32_2 : i32
    %7 = arith.addi %1, %6 : i32
    %8 = arith.index_cast %7 : i32 to index
    %9 = memref.load %arg1[%8] : memref<16xi32, #tpu.memory_space<smem>>
    %c0_i32_3 = arith.constant 0 : i32
    %c0_i32_4 = arith.constant 0 : i32
    %10 = tpu.memref_slice %arg2[%9, %c0_i32_4] : memref<256x128xf32, #tpu.memory_space<any>> -> memref<1x128xf32, #tpu.memory_space<any>>
    %c0_i32_5 = arith.constant 0 : i32
    %11 = tpu.memref_slice %arg3[%6, %c0_i32_5] : memref<16x128xf32, #tpu.memory_space<vmem>> -> memref<1x128xf32, #tpu.memory_space<vmem>>
    %12 = tpu.memref_slice %arg4[%c0_i32_3] : memref<16x!tpu.dma_semaphore, #tpu.memory_space<semaphore_mem>> -> memref<1x!tpu.dma_semaphore, #tpu.memory_space<semaphore_mem>>
    %13 = tpu.memref_squeeze %12 : memref<1x!tpu.dma_semaphore, #tpu.memory_space<semaphore_mem>> -> memref<!tpu.dma_semaphore, #tpu.memory_space<semaphore_mem>>
    tpu.enqueue_dma source(%10 : memref<1x128xf32, #tpu.memory_space<any>>) target(%11 : memref<1x128xf32, #tpu.memory_space<vmem>>) target_semaphore(%13 : memref<!tpu.dma_semaphore, #tpu.memory_space<semaphore_mem>>)
    %c1_i32_6 = arith.constant 1 : i32
    %14 = arith.addi %5, %c1_i32_6 : i32
    %15 = arith.addi %1, %14 : i32
    %16 = arith.index_cast %15 : i32 to index
    %17 = memref.load %arg1[%16] : memref<16xi32, #tpu.memory_space<smem>>
    %c1_i32_7 = arith.constant 1 : i32
    %c0_i32_8 = arith.constant 0 : i32
    %18 = tpu.memref_slice %arg2[%17, %c0_i32_8] : memref<256x128xf32, #tpu.memory_space<any>> -> memref<1x128xf32, #tpu.memory_space<any>>
    %c0_i32_9 = arith.constant 0 : i32
    %19 = tpu.memref_slice %arg3[%14, %c0_i32_9] : memref<16x128xf32, #tpu.memory_space<vmem>> -> memref<1x128xf32, #tpu.memory_space<vmem>>
    %20 = tpu.memref_slice %arg4[%c1_i32_7] : memref<16x!tpu.dma_semaphore, #tpu.memory_space<semaphore_mem>> -> memref<1x!tpu.dma_semaphore, #tpu.memory_space<semaphore_mem>>
    %21 = tpu.memref_squeeze %20 : memref<1x!tpu.dma_semaphore, #tpu.memory_space<semaphore_mem>> -> memref<!tpu.dma_semaphore, #tpu.memory_space<semaphore_mem>>
    tpu.enqueue_dma source(%18 : memref<1x128xf32, #tpu.memory_space<any>>) target(%19 : memref<1x128xf32, #tpu.memory_space<vmem>>) target_semaphore(%21 : memref<!tpu.dma_semaphore, #tpu.memory_space<semaphore_mem>>)
    %c2_i32 = arith.constant 2 : i32
    %22 = arith.addi %5, %c2_i32 : i32
    %23 = arith.addi %1, %22 : i32
    %24 = arith.index_cast %23 : i32 to index
    %25 = memref.load %arg1[%24] : memref<16xi32, #tpu.memory_space<smem>>
    %c2_i32_10 = arith.constant 2 : i32
    %c0_i32_11 = arith.constant 0 : i32
    %26 = tpu.memref_slice %arg2[%25, %c0_i32_11] : memref<256x128xf32, #tpu.memory_space<any>> -> memref<1x128xf32, #tpu.memory_space<any>>
    %c0_i32_12 = arith.constant 0 : i32
    %27 = tpu.memref_slice %arg3[%22, %c0_i32_12] : memref<16x128xf32, #tpu.memory_space<vmem>> -> memref<1x128xf32, #tpu.memory_space<vmem>>
    %28 = tpu.memref_slice %arg4[%c2_i32_10] : memref<16x!tpu.dma_semaphore, #tpu.memory_space<semaphore_mem>> -> memref<1x!tpu.dma_semaphore, #tpu.memory_space<semaphore_mem>>
    %29 = tpu.memref_squeeze %28 : memref<1x!tpu.dma_semaphore, #tpu.memory_space<semaphore_mem>> -> memref<!tpu.dma_semaphore, #tpu.memory_space<semaphore_mem>>
    tpu.enqueue_dma source(%26 : memref<1x128xf32, #tpu.memory_space<any>>) target(%27 : memref<1x128xf32, #tpu.memory_space<vmem>>) target_semaphore(%29 : memref<!tpu.dma_semaphore, #tpu.memory_space<semaphore_mem>>)
    %c3_i32 = arith.constant 3 : i32
    %30 = arith.addi %5, %c3_i32 : i32
    %31 = arith.addi %1, %30 : i32
    %32 = arith.index_cast %31 : i32 to index
    %33 = memref.load %arg1[%32] : memref<16xi32, #tpu.memory_space<smem>>
    %c3_i32_13 = arith.constant 3 : i32
    %c0_i32_14 = arith.constant 0 : i32
    %34 = tpu.memref_slice %arg2[%33, %c0_i32_14] : memref<256x128xf32, #tpu.memory_space<any>> -> memref<1x128xf32, #tpu.memory_space<any>>
    %c0_i32_15 = arith.constant 0 : i32
    %35 = tpu.memref_slice %arg3[%30, %c0_i32_15] : memref<16x128xf32, #tpu.memory_space<vmem>> -> memref<1x128xf32, #tpu.memory_space<vmem>>
    %36 = tpu.memref_slice %arg4[%c3_i32_13] : memref<16x!tpu.dma_semaphore, #tpu.memory_space<semaphore_mem>> -> memref<1x!tpu.dma_semaphore, #tpu.memory_space<semaphore_mem>>
    %37 = tpu.memref_squeeze %36 : memref<1x!tpu.dma_semaphore, #tpu.memory_space<semaphore_mem>> -> memref<!tpu.dma_semaphore, #tpu.memory_space<semaphore_mem>>
    tpu.enqueue_dma source(%34 : memref<1x128xf32, #tpu.memory_space<any>>) target(%35 : memref<1x128xf32, #tpu.memory_space<vmem>>) target_semaphore(%37 : memref<!tpu.dma_semaphore, #tpu.memory_space<semaphore_mem>>)
    %c4_i32 = arith.constant 4 : i32
    %38 = arith.addi %5, %c4_i32 : i32
    %39 = arith.addi %1, %38 : i32
    %40 = arith.index_cast %39 : i32 to index
    %41 = memref.load %arg1[%40] : memref<16xi32, #tpu.memory_space<smem>>
    %c4_i32_16 = arith.constant 4 : i32
    %c0_i32_17 = arith.constant 0 : i32
    %42 = tpu.memref_slice %arg2[%41, %c0_i32_17] : memref<256x128xf32, #tpu.memory_space<any>> -> memref<1x128xf32, #tpu.memory_space<any>>
    %c0_i32_18 = arith.constant 0 : i32
    %43 = tpu.memref_slice %arg3[%38, %c0_i32_18] : memref<16x128xf32, #tpu.memory_space<vmem>> -> memref<1x128xf32, #tpu.memory_space<vmem>>
    %44 = tpu.memref_slice %arg4[%c4_i32_16] : memref<16x!tpu.dma_semaphore, #tpu.memory_space<semaphore_mem>> -> memref<1x!tpu.dma_semaphore, #tpu.memory_space<semaphore_mem>>
    %45 = tpu.memref_squeeze %44 : memref<1x!tpu.dma_semaphore, #tpu.memory_space<semaphore_mem>> -> memref<!tpu.dma_semaphore, #tpu.memory_space<semaphore_mem>>
    tpu.enqueue_dma source(%42 : memref<1x128xf32, #tpu.memory_space<any>>) target(%43 : memref<1x128xf32, #tpu.memory_space<vmem>>) target_semaphore(%45 : memref<!tpu.dma_semaphore, #tpu.memory_space<semaphore_mem>>)
    %c5_i32 = arith.constant 5 : i32
    %46 = arith.addi %5, %c5_i32 : i32
    %47 = arith.addi %1, %46 : i32
    %48 = arith.index_cast %47 : i32 to index
    %49 = memref.load %arg1[%48] : memref<16xi32, #tpu.memory_space<smem>>
    %c5_i32_19 = arith.constant 5 : i32
    %c0_i32_20 = arith.constant 0 : i32
    %50 = tpu.memref_slice %arg2[%49, %c0_i32_20] : memref<256x128xf32, #tpu.memory_space<any>> -> memref<1x128xf32, #tpu.memory_space<any>>
    %c0_i32_21 = arith.constant 0 : i32
    %51 = tpu.memref_slice %arg3[%46, %c0_i32_21] : memref<16x128xf32, #tpu.memory_space<vmem>> -> memref<1x128xf32, #tpu.memory_space<vmem>>
    %52 = tpu.memref_slice %arg4[%c5_i32_19] : memref<16x!tpu.dma_semaphore, #tpu.memory_space<semaphore_mem>> -> memref<1x!tpu.dma_semaphore, #tpu.memory_space<semaphore_mem>>
    %53 = tpu.memref_squeeze %52 : memref<1x!tpu.dma_semaphore, #tpu.memory_space<semaphore_mem>> -> memref<!tpu.dma_semaphore, #tpu.memory_space<semaphore_mem>>
    tpu.enqueue_dma source(%50 : memref<1x128xf32, #tpu.memory_space<any>>) target(%51 : memref<1x128xf32, #tpu.memory_space<vmem>>) target_semaphore(%53 : memref<!tpu.dma_semaphore, #tpu.memory_space<semaphore_mem>>)
    %c6_i32 = arith.constant 6 : i32
    %54 = arith.addi %5, %c6_i32 : i32
    %55 = arith.addi %1, %54 : i32
    %56 = arith.index_cast %55 : i32 to index
    %57 = memref.load %arg1[%56] : memref<16xi32, #tpu.memory_space<smem>>
    %c6_i32_22 = arith.constant 6 : i32
    %c0_i32_23 = arith.constant 0 : i32
    %58 = tpu.memref_slice %arg2[%57, %c0_i32_23] : memref<256x128xf32, #tpu.memory_space<any>> -> memref<1x128xf32, #tpu.memory_space<any>>
    %c0_i32_24 = arith.constant 0 : i32
    %59 = tpu.memref_slice %arg3[%54, %c0_i32_24] : memref<16x128xf32, #tpu.memory_space<vmem>> -> memref<1x128xf32, #tpu.memory_space<vmem>>
    %60 = tpu.memref_slice %arg4[%c6_i32_22] : memref<16x!tpu.dma_semaphore, #tpu.memory_space<semaphore_mem>> -> memref<1x!tpu.dma_semaphore, #tpu.memory_space<semaphore_mem>>
    %61 = tpu.memref_squeeze %60 : memref<1x!tpu.dma_semaphore, #tpu.memory_space<semaphore_mem>> -> memref<!tpu.dma_semaphore, #tpu.memory_space<semaphore_mem>>
    tpu.enqueue_dma source(%58 : memref<1x128xf32, #tpu.memory_space<any>>) target(%59 : memref<1x128xf32, #tpu.memory_space<vmem>>) target_semaphore(%61 : memref<!tpu.dma_semaphore, #tpu.memory_space<semaphore_mem>>)
    %c7_i32 = arith.constant 7 : i32
    %62 = arith.addi %5, %c7_i32 : i32
    %63 = arith.addi %1, %62 : i32
    %64 = arith.index_cast %63 : i32 to index
    %65 = memref.load %arg1[%64] : memref<16xi32, #tpu.memory_space<smem>>
    %c7_i32_25 = arith.constant 7 : i32
    %c0_i32_26 = arith.constant 0 : i32
    %66 = tpu.memref_slice %arg2[%65, %c0_i32_26] : memref<256x128xf32, #tpu.memory_space<any>> -> memref<1x128xf32, #tpu.memory_space<any>>
    %c0_i32_27 = arith.constant 0 : i32
    %67 = tpu.memref_slice %arg3[%62, %c0_i32_27] : memref<16x128xf32, #tpu.memory_space<vmem>> -> memref<1x128xf32, #tpu.memory_space<vmem>>
    %68 = tpu.memref_slice %arg4[%c7_i32_25] : memref<16x!tpu.dma_semaphore, #tpu.memory_space<semaphore_mem>> -> memref<1x!tpu.dma_semaphore, #tpu.memory_space<semaphore_mem>>
    %69 = tpu.memref_squeeze %68 : memref<1x!tpu.dma_semaphore, #tpu.memory_space<semaphore_mem>> -> memref<!tpu.dma_semaphore, #tpu.memory_space<semaphore_mem>>
    tpu.enqueue_dma source(%66 : memref<1x128xf32, #tpu.memory_space<any>>) target(%67 : memref<1x128xf32, #tpu.memory_space<vmem>>) target_semaphore(%69 : memref<!tpu.dma_semaphore, #tpu.memory_space<semaphore_mem>>)
    %c8_i32 = arith.constant 8 : i32
    %70 = arith.addi %5, %c8_i32 : i32
    %71 = arith.addi %1, %70 : i32
    %72 = arith.index_cast %71 : i32 to index
    %73 = memref.load %arg1[%72] : memref<16xi32, #tpu.memory_space<smem>>
    %c8_i32_28 = arith.constant 8 : i32
    %c0_i32_29 = arith.constant 0 : i32
    %74 = tpu.memref_slice %arg2[%73, %c0_i32_29] : memref<256x128xf32, #tpu.memory_space<any>> -> memref<1x128xf32, #tpu.memory_space<any>>
    %c0_i32_30 = arith.constant 0 : i32
    %75 = tpu.memref_slice %arg3[%70, %c0_i32_30] : memref<16x128xf32, #tpu.memory_space<vmem>> -> memref<1x128xf32, #tpu.memory_space<vmem>>
    %76 = tpu.memref_slice %arg4[%c8_i32_28] : memref<16x!tpu.dma_semaphore, #tpu.memory_space<semaphore_mem>> -> memref<1x!tpu.dma_semaphore, #tpu.memory_space<semaphore_mem>>
    %77 = tpu.memref_squeeze %76 : memref<1x!tpu.dma_semaphore, #tpu.memory_space<semaphore_mem>> -> memref<!tpu.dma_semaphore, #tpu.memory_space<semaphore_mem>>
    tpu.enqueue_dma source(%74 : memref<1x128xf32, #tpu.memory_space<any>>) target(%75 : memref<1x128xf32, #tpu.memory_space<vmem>>) target_semaphore(%77 : memref<!tpu.dma_semaphore, #tpu.memory_space<semaphore_mem>>)
    %c9_i32 = arith.constant 9 : i32
    %78 = arith.addi %5, %c9_i32 : i32
    %79 = arith.addi %1, %78 : i32
    %80 = arith.index_cast %79 : i32 to index
    %81 = memref.load %arg1[%80] : memref<16xi32, #tpu.memory_space<smem>>
    %c9_i32_31 = arith.constant 9 : i32
    %c0_i32_32 = arith.constant 0 : i32
    %82 = tpu.memref_slice %arg2[%81, %c0_i32_32] : memref<256x128xf32, #tpu.memory_space<any>> -> memref<1x128xf32, #tpu.memory_space<any>>
    %c0_i32_33 = arith.constant 0 : i32
    %83 = tpu.memref_slice %arg3[%78, %c0_i32_33] : memref<16x128xf32, #tpu.memory_space<vmem>> -> memref<1x128xf32, #tpu.memory_space<vmem>>
    %84 = tpu.memref_slice %arg4[%c9_i32_31] : memref<16x!tpu.dma_semaphore, #tpu.memory_space<semaphore_mem>> -> memref<1x!tpu.dma_semaphore, #tpu.memory_space<semaphore_mem>>
    %85 = tpu.memref_squeeze %84 : memref<1x!tpu.dma_semaphore, #tpu.memory_space<semaphore_mem>> -> memref<!tpu.dma_semaphore, #tpu.memory_space<semaphore_mem>>
    tpu.enqueue_dma source(%82 : memref<1x128xf32, #tpu.memory_space<any>>) target(%83 : memref<1x128xf32, #tpu.memory_space<vmem>>) target_semaphore(%85 : memref<!tpu.dma_semaphore, #tpu.memory_space<semaphore_mem>>)
    %c10_i32 = arith.constant 10 : i32
    %86 = arith.addi %5, %c10_i32 : i32
    %87 = arith.addi %1, %86 : i32
    %88 = arith.index_cast %87 : i32 to index
    %89 = memref.load %arg1[%88] : memref<16xi32, #tpu.memory_space<smem>>
    %c10_i32_34 = arith.constant 10 : i32
    %c0_i32_35 = arith.constant 0 : i32
    %90 = tpu.memref_slice %arg2[%89, %c0_i32_35] : memref<256x128xf32, #tpu.memory_space<any>> -> memref<1x128xf32, #tpu.memory_space<any>>
    %c0_i32_36 = arith.constant 0 : i32
    %91 = tpu.memref_slice %arg3[%86, %c0_i32_36] : memref<16x128xf32, #tpu.memory_space<vmem>> -> memref<1x128xf32, #tpu.memory_space<vmem>>
    %92 = tpu.memref_slice %arg4[%c10_i32_34] : memref<16x!tpu.dma_semaphore, #tpu.memory_space<semaphore_mem>> -> memref<1x!tpu.dma_semaphore, #tpu.memory_space<semaphore_mem>>
    %93 = tpu.memref_squeeze %92 : memref<1x!tpu.dma_semaphore, #tpu.memory_space<semaphore_mem>> -> memref<!tpu.dma_semaphore, #tpu.memory_space<semaphore_mem>>
    tpu.enqueue_dma source(%90 : memref<1x128xf32, #tpu.memory_space<any>>) target(%91 : memref<1x128xf32, #tpu.memory_space<vmem>>) target_semaphore(%93 : memref<!tpu.dma_semaphore, #tpu.memory_space<semaphore_mem>>)
    %c11_i32 = arith.constant 11 : i32
    %94 = arith.addi %5, %c11_i32 : i32
    %95 = arith.addi %1, %94 : i32
    %96 = arith.index_cast %95 : i32 to index
    %97 = memref.load %arg1[%96] : memref<16xi32, #tpu.memory_space<smem>>
    %c11_i32_37 = arith.constant 11 : i32
    %c0_i32_38 = arith.constant 0 : i32
    %98 = tpu.memref_slice %arg2[%97, %c0_i32_38] : memref<256x128xf32, #tpu.memory_space<any>> -> memref<1x128xf32, #tpu.memory_space<any>>
    %c0_i32_39 = arith.constant 0 : i32
    %99 = tpu.memref_slice %arg3[%94, %c0_i32_39] : memref<16x128xf32, #tpu.memory_space<vmem>> -> memref<1x128xf32, #tpu.memory_space<vmem>>
    %100 = tpu.memref_slice %arg4[%c11_i32_37] : memref<16x!tpu.dma_semaphore, #tpu.memory_space<semaphore_mem>> -> memref<1x!tpu.dma_semaphore, #tpu.memory_space<semaphore_mem>>
    %101 = tpu.memref_squeeze %100 : memref<1x!tpu.dma_semaphore, #tpu.memory_space<semaphore_mem>> -> memref<!tpu.dma_semaphore, #tpu.memory_space<semaphore_mem>>
    tpu.enqueue_dma source(%98 : memref<1x128xf32, #tpu.memory_space<any>>) target(%99 : memref<1x128xf32, #tpu.memory_space<vmem>>) target_semaphore(%101 : memref<!tpu.dma_semaphore, #tpu.memory_space<semaphore_mem>>)
    %c12_i32 = arith.constant 12 : i32
    %102 = arith.addi %5, %c12_i32 : i32
    %103 = arith.addi %1, %102 : i32
    %104 = arith.index_cast %103 : i32 to index
    %105 = memref.load %arg1[%104] : memref<16xi32, #tpu.memory_space<smem>>
    %c12_i32_40 = arith.constant 12 : i32
    %c0_i32_41 = arith.constant 0 : i32
    %106 = tpu.memref_slice %arg2[%105, %c0_i32_41] : memref<256x128xf32, #tpu.memory_space<any>> -> memref<1x128xf32, #tpu.memory_space<any>>
    %c0_i32_42 = arith.constant 0 : i32
    %107 = tpu.memref_slice %arg3[%102, %c0_i32_42] : memref<16x128xf32, #tpu.memory_space<vmem>> -> memref<1x128xf32, #tpu.memory_space<vmem>>
    %108 = tpu.memref_slice %arg4[%c12_i32_40] : memref<16x!tpu.dma_semaphore, #tpu.memory_space<semaphore_mem>> -> memref<1x!tpu.dma_semaphore, #tpu.memory_space<semaphore_mem>>
    %109 = tpu.memref_squeeze %108 : memref<1x!tpu.dma_semaphore, #tpu.memory_space<semaphore_mem>> -> memref<!tpu.dma_semaphore, #tpu.memory_space<semaphore_mem>>
    tpu.enqueue_dma source(%106 : memref<1x128xf32, #tpu.memory_space<any>>) target(%107 : memref<1x128xf32, #tpu.memory_space<vmem>>) target_semaphore(%109 : memref<!tpu.dma_semaphore, #tpu.memory_space<semaphore_mem>>)
    %c13_i32 = arith.constant 13 : i32
    %110 = arith.addi %5, %c13_i32 : i32
    %111 = arith.addi %1, %110 : i32
    %112 = arith.index_cast %111 : i32 to index
    %113 = memref.load %arg1[%112] : memref<16xi32, #tpu.memory_space<smem>>
    %c13_i32_43 = arith.constant 13 : i32
    %c0_i32_44 = arith.constant 0 : i32
    %114 = tpu.memref_slice %arg2[%113, %c0_i32_44] : memref<256x128xf32, #tpu.memory_space<any>> -> memref<1x128xf32, #tpu.memory_space<any>>
    %c0_i32_45 = arith.constant 0 : i32
    %115 = tpu.memref_slice %arg3[%110, %c0_i32_45] : memref<16x128xf32, #tpu.memory_space<vmem>> -> memref<1x128xf32, #tpu.memory_space<vmem>>
    %116 = tpu.memref_slice %arg4[%c13_i32_43] : memref<16x!tpu.dma_semaphore, #tpu.memory_space<semaphore_mem>> -> memref<1x!tpu.dma_semaphore, #tpu.memory_space<semaphore_mem>>
    %117 = tpu.memref_squeeze %116 : memref<1x!tpu.dma_semaphore, #tpu.memory_space<semaphore_mem>> -> memref<!tpu.dma_semaphore, #tpu.memory_space<semaphore_mem>>
    tpu.enqueue_dma source(%114 : memref<1x128xf32, #tpu.memory_space<any>>) target(%115 : memref<1x128xf32, #tpu.memory_space<vmem>>) target_semaphore(%117 : memref<!tpu.dma_semaphore, #tpu.memory_space<semaphore_mem>>)
    %c14_i32 = arith.constant 14 : i32
    %118 = arith.addi %5, %c14_i32 : i32
    %119 = arith.addi %1, %118 : i32
    %120 = arith.index_cast %119 : i32 to index
    %121 = memref.load %arg1[%120] : memref<16xi32, #tpu.memory_space<smem>>
    %c14_i32_46 = arith.constant 14 : i32
    %c0_i32_47 = arith.constant 0 : i32
    %122 = tpu.memref_slice %arg2[%121, %c0_i32_47] : memref<256x128xf32, #tpu.memory_space<any>> -> memref<1x128xf32, #tpu.memory_space<any>>
    %c0_i32_48 = arith.constant 0 : i32
    %123 = tpu.memref_slice %arg3[%118, %c0_i32_48] : memref<16x128xf32, #tpu.memory_space<vmem>> -> memref<1x128xf32, #tpu.memory_space<vmem>>
    %124 = tpu.memref_slice %arg4[%c14_i32_46] : memref<16x!tpu.dma_semaphore, #tpu.memory_space<semaphore_mem>> -> memref<1x!tpu.dma_semaphore, #tpu.memory_space<semaphore_mem>>
    %125 = tpu.memref_squeeze %124 : memref<1x!tpu.dma_semaphore, #tpu.memory_space<semaphore_mem>> -> memref<!tpu.dma_semaphore, #tpu.memory_space<semaphore_mem>>
    tpu.enqueue_dma source(%122 : memref<1x128xf32, #tpu.memory_space<any>>) target(%123 : memref<1x128xf32, #tpu.memory_space<vmem>>) target_semaphore(%125 : memref<!tpu.dma_semaphore, #tpu.memory_space<semaphore_mem>>)
    %c15_i32 = arith.constant 15 : i32
    %126 = arith.addi %5, %c15_i32 : i32
    %127 = arith.addi %1, %126 : i32
    %128 = arith.index_cast %127 : i32 to index
    %129 = memref.load %arg1[%128] : memref<16xi32, #tpu.memory_space<smem>>
    %c15_i32_49 = arith.constant 15 : i32
    %c0_i32_50 = arith.constant 0 : i32
    %130 = tpu.memref_slice %arg2[%129, %c0_i32_50] : memref<256x128xf32, #tpu.memory_space<any>> -> memref<1x128xf32, #tpu.memory_space<any>>
    %c0_i32_51 = arith.constant 0 : i32
    %131 = tpu.memref_slice %arg3[%126, %c0_i32_51] : memref<16x128xf32, #tpu.memory_space<vmem>> -> memref<1x128xf32, #tpu.memory_space<vmem>>
    %132 = tpu.memref_slice %arg4[%c15_i32_49] : memref<16x!tpu.dma_semaphore, #tpu.memory_space<semaphore_mem>> -> memref<1x!tpu.dma_semaphore, #tpu.memory_space<semaphore_mem>>
    %133 = tpu.memref_squeeze %132 : memref<1x!tpu.dma_semaphore, #tpu.memory_space<semaphore_mem>> -> memref<!tpu.dma_semaphore, #tpu.memory_space<semaphore_mem>>
    tpu.enqueue_dma source(%130 : memref<1x128xf32, #tpu.memory_space<any>>) target(%131 : memref<1x128xf32, #tpu.memory_space<vmem>>) target_semaphore(%133 : memref<!tpu.dma_semaphore, #tpu.memory_space<semaphore_mem>>)
    %c1_i32_52 = arith.constant 1 : i32
    %c0_i32_53 = arith.constant 0 : i32
    %c0_i32_54 = arith.constant 0 : i32
    %c0_i32_55 = arith.constant 0 : i32
    %134 = tpu.memref_slice %arg2[%c0_i32_54, %c0_i32_55] : memref<256x128xf32, #tpu.memory_space<any>> -> memref<1x128xf32, #tpu.memory_space<any>>
    %c0_i32_56 = arith.constant 0 : i32
    %c0_i32_57 = arith.constant 0 : i32
    %135 = tpu.memref_slice %arg3[%c0_i32_56, %c0_i32_57] : memref<16x128xf32, #tpu.memory_space<vmem>> -> memref<1x128xf32, #tpu.memory_space<vmem>>
    %136 = tpu.memref_slice %arg4[%c0_i32_53] : memref<16x!tpu.dma_semaphore, #tpu.memory_space<semaphore_mem>> -> memref<1x!tpu.dma_semaphore, #tpu.memory_space<semaphore_mem>>
    %137 = tpu.memref_squeeze %136 : memref<1x!tpu.dma_semaphore, #tpu.memory_space<semaphore_mem>> -> memref<!tpu.dma_semaphore, #tpu.memory_space<semaphore_mem>>
    tpu.wait_dma2 semaphore(%137 : memref<!tpu.dma_semaphore, #tpu.memory_space<semaphore_mem>>) src(%134 : memref<1x128xf32, #tpu.memory_space<any>>) dst(%135 : memref<1x128xf32, #tpu.memory_space<vmem>>)
    %c1_i32_58 = arith.constant 1 : i32
    %c0_i32_59 = arith.constant 0 : i32
    %c0_i32_60 = arith.constant 0 : i32
    %138 = tpu.memref_slice %arg2[%c0_i32_59, %c0_i32_60] : memref<256x128xf32, #tpu.memory_space<any>> -> memref<1x128xf32, #tpu.memory_space<any>>
    %c0_i32_61 = arith.constant 0 : i32
    %c0_i32_62 = arith.constant 0 : i32
    %139 = tpu.memref_slice %arg3[%c0_i32_61, %c0_i32_62] : memref<16x128xf32, #tpu.memory_space<vmem>> -> memref<1x128xf32, #tpu.memory_space<vmem>>
    %140 = tpu.memref_slice %arg4[%c1_i32_58] : memref<16x!tpu.dma_semaphore, #tpu.memory_space<semaphore_mem>> -> memref<1x!tpu.dma_semaphore, #tpu.memory_space<semaphore_mem>>
    %141 = tpu.memref_squeeze %140 : memref<1x!tpu.dma_semaphore, #tpu.memory_space<semaphore_mem>> -> memref<!tpu.dma_semaphore, #tpu.memory_space<semaphore_mem>>
    tpu.wait_dma2 semaphore(%141 : memref<!tpu.dma_semaphore, #tpu.memory_space<semaphore_mem>>) src(%138 : memref<1x128xf32, #tpu.memory_space<any>>) dst(%139 : memref<1x128xf32, #tpu.memory_space<vmem>>)
    %c2_i32_63 = arith.constant 2 : i32
    %c0_i32_64 = arith.constant 0 : i32
    %c0_i32_65 = arith.constant 0 : i32
    %142 = tpu.memref_slice %arg2[%c0_i32_64, %c0_i32_65] : memref<256x128xf32, #tpu.memory_space<any>> -> memref<1x128xf32, #tpu.memory_space<any>>
    %c0_i32_66 = arith.constant 0 : i32
    %c0_i32_67 = arith.constant 0 : i32
    %143 = tpu.memref_slice %arg3[%c0_i32_66, %c0_i32_67] : memref<16x128xf32, #tpu.memory_space<vmem>> -> memref<1x128xf32, #tpu.memory_space<vmem>>
    %144 = tpu.memref_slice %arg4[%c2_i32_63] : memref<16x!tpu.dma_semaphore, #tpu.memory_space<semaphore_mem>> -> memref<1x!tpu.dma_semaphore, #tpu.memory_space<semaphore_mem>>
    %145 = tpu.memref_squeeze %144 : memref<1x!tpu.dma_semaphore, #tpu.memory_space<semaphore_mem>> -> memref<!tpu.dma_semaphore, #tpu.memory_space<semaphore_mem>>
    tpu.wait_dma2 semaphore(%145 : memref<!tpu.dma_semaphore, #tpu.memory_space<semaphore_mem>>) src(%142 : memref<1x128xf32, #tpu.memory_space<any>>) dst(%143 : memref<1x128xf32, #tpu.memory_space<vmem>>)
    %c3_i32_68 = arith.constant 3 : i32
    %c0_i32_69 = arith.constant 0 : i32
    %c0_i32_70 = arith.constant 0 : i32
    %146 = tpu.memref_slice %arg2[%c0_i32_69, %c0_i32_70] : memref<256x128xf32, #tpu.memory_space<any>> -> memref<1x128xf32, #tpu.memory_space<any>>
    %c0_i32_71 = arith.constant 0 : i32
    %c0_i32_72 = arith.constant 0 : i32
    %147 = tpu.memref_slice %arg3[%c0_i32_71, %c0_i32_72] : memref<16x128xf32, #tpu.memory_space<vmem>> -> memref<1x128xf32, #tpu.memory_space<vmem>>
    %148 = tpu.memref_slice %arg4[%c3_i32_68] : memref<16x!tpu.dma_semaphore, #tpu.memory_space<semaphore_mem>> -> memref<1x!tpu.dma_semaphore, #tpu.memory_space<semaphore_mem>>
    %149 = tpu.memref_squeeze %148 : memref<1x!tpu.dma_semaphore, #tpu.memory_space<semaphore_mem>> -> memref<!tpu.dma_semaphore, #tpu.memory_space<semaphore_mem>>
    tpu.wait_dma2 semaphore(%149 : memref<!tpu.dma_semaphore, #tpu.memory_space<semaphore_mem>>) src(%146 : memref<1x128xf32, #tpu.memory_space<any>>) dst(%147 : memref<1x128xf32, #tpu.memory_space<vmem>>)
    %c4_i32_73 = arith.constant 4 : i32
    %c0_i32_74 = arith.constant 0 : i32
    %c0_i32_75 = arith.constant 0 : i32
    %150 = tpu.memref_slice %arg2[%c0_i32_74, %c0_i32_75] : memref<256x128xf32, #tpu.memory_space<any>> -> memref<1x128xf32, #tpu.memory_space<any>>
    %c0_i32_76 = arith.constant 0 : i32
    %c0_i32_77 = arith.constant 0 : i32
    %151 = tpu.memref_slice %arg3[%c0_i32_76, %c0_i32_77] : memref<16x128xf32, #tpu.memory_space<vmem>> -> memref<1x128xf32, #tpu.memory_space<vmem>>
    %152 = tpu.memref_slice %arg4[%c4_i32_73] : memref<16x!tpu.dma_semaphore, #tpu.memory_space<semaphore_mem>> -> memref<1x!tpu.dma_semaphore, #tpu.memory_space<semaphore_mem>>
    %153 = tpu.memref_squeeze %152 : memref<1x!tpu.dma_semaphore, #tpu.memory_space<semaphore_mem>> -> memref<!tpu.dma_semaphore, #tpu.memory_space<semaphore_mem>>
    tpu.wait_dma2 semaphore(%153 : memref<!tpu.dma_semaphore, #tpu.memory_space<semaphore_mem>>) src(%150 : memref<1x128xf32, #tpu.memory_space<any>>) dst(%151 : memref<1x128xf32, #tpu.memory_space<vmem>>)
    %c5_i32_78 = arith.constant 5 : i32
    %c0_i32_79 = arith.constant 0 : i32
    %c0_i32_80 = arith.constant 0 : i32
    %154 = tpu.memref_slice %arg2[%c0_i32_79, %c0_i32_80] : memref<256x128xf32, #tpu.memory_space<any>> -> memref<1x128xf32, #tpu.memory_space<any>>
    %c0_i32_81 = arith.constant 0 : i32
    %c0_i32_82 = arith.constant 0 : i32
    %155 = tpu.memref_slice %arg3[%c0_i32_81, %c0_i32_82] : memref<16x128xf32, #tpu.memory_space<vmem>> -> memref<1x128xf32, #tpu.memory_space<vmem>>
    %156 = tpu.memref_slice %arg4[%c5_i32_78] : memref<16x!tpu.dma_semaphore, #tpu.memory_space<semaphore_mem>> -> memref<1x!tpu.dma_semaphore, #tpu.memory_space<semaphore_mem>>
    %157 = tpu.memref_squeeze %156 : memref<1x!tpu.dma_semaphore, #tpu.memory_space<semaphore_mem>> -> memref<!tpu.dma_semaphore, #tpu.memory_space<semaphore_mem>>
    tpu.wait_dma2 semaphore(%157 : memref<!tpu.dma_semaphore, #tpu.memory_space<semaphore_mem>>) src(%154 : memref<1x128xf32, #tpu.memory_space<any>>) dst(%155 : memref<1x128xf32, #tpu.memory_space<vmem>>)
    %c6_i32_83 = arith.constant 6 : i32
    %c0_i32_84 = arith.constant 0 : i32
    %c0_i32_85 = arith.constant 0 : i32
    %158 = tpu.memref_slice %arg2[%c0_i32_84, %c0_i32_85] : memref<256x128xf32, #tpu.memory_space<any>> -> memref<1x128xf32, #tpu.memory_space<any>>
    %c0_i32_86 = arith.constant 0 : i32
    %c0_i32_87 = arith.constant 0 : i32
    %159 = tpu.memref_slice %arg3[%c0_i32_86, %c0_i32_87] : memref<16x128xf32, #tpu.memory_space<vmem>> -> memref<1x128xf32, #tpu.memory_space<vmem>>
    %160 = tpu.memref_slice %arg4[%c6_i32_83] : memref<16x!tpu.dma_semaphore, #tpu.memory_space<semaphore_mem>> -> memref<1x!tpu.dma_semaphore, #tpu.memory_space<semaphore_mem>>
    %161 = tpu.memref_squeeze %160 : memref<1x!tpu.dma_semaphore, #tpu.memory_space<semaphore_mem>> -> memref<!tpu.dma_semaphore, #tpu.memory_space<semaphore_mem>>
    tpu.wait_dma2 semaphore(%161 : memref<!tpu.dma_semaphore, #tpu.memory_space<semaphore_mem>>) src(%158 : memref<1x128xf32, #tpu.memory_space<any>>) dst(%159 : memref<1x128xf32, #tpu.memory_space<vmem>>)
    %c7_i32_88 = arith.constant 7 : i32
    %c0_i32_89 = arith.constant 0 : i32
    %c0_i32_90 = arith.constant 0 : i32
    %162 = tpu.memref_slice %arg2[%c0_i32_89, %c0_i32_90] : memref<256x128xf32, #tpu.memory_space<any>> -> memref<1x128xf32, #tpu.memory_space<any>>
    %c0_i32_91 = arith.constant 0 : i32
    %c0_i32_92 = arith.constant 0 : i32
    %163 = tpu.memref_slice %arg3[%c0_i32_91, %c0_i32_92] : memref<16x128xf32, #tpu.memory_space<vmem>> -> memref<1x128xf32, #tpu.memory_space<vmem>>
    %164 = tpu.memref_slice %arg4[%c7_i32_88] : memref<16x!tpu.dma_semaphore, #tpu.memory_space<semaphore_mem>> -> memref<1x!tpu.dma_semaphore, #tpu.memory_space<semaphore_mem>>
    %165 = tpu.memref_squeeze %164 : memref<1x!tpu.dma_semaphore, #tpu.memory_space<semaphore_mem>> -> memref<!tpu.dma_semaphore, #tpu.memory_space<semaphore_mem>>
    tpu.wait_dma2 semaphore(%165 : memref<!tpu.dma_semaphore, #tpu.memory_space<semaphore_mem>>) src(%162 : memref<1x128xf32, #tpu.memory_space<any>>) dst(%163 : memref<1x128xf32, #tpu.memory_space<vmem>>)
    %c8_i32_93 = arith.constant 8 : i32
    %c0_i32_94 = arith.constant 0 : i32
    %c0_i32_95 = arith.constant 0 : i32
    %166 = tpu.memref_slice %arg2[%c0_i32_94, %c0_i32_95] : memref<256x128xf32, #tpu.memory_space<any>> -> memref<1x128xf32, #tpu.memory_space<any>>
    %c0_i32_96 = arith.constant 0 : i32
    %c0_i32_97 = arith.constant 0 : i32
    %167 = tpu.memref_slice %arg3[%c0_i32_96, %c0_i32_97] : memref<16x128xf32, #tpu.memory_space<vmem>> -> memref<1x128xf32, #tpu.memory_space<vmem>>
    %168 = tpu.memref_slice %arg4[%c8_i32_93] : memref<16x!tpu.dma_semaphore, #tpu.memory_space<semaphore_mem>> -> memref<1x!tpu.dma_semaphore, #tpu.memory_space<semaphore_mem>>
    %169 = tpu.memref_squeeze %168 : memref<1x!tpu.dma_semaphore, #tpu.memory_space<semaphore_mem>> -> memref<!tpu.dma_semaphore, #tpu.memory_space<semaphore_mem>>
    tpu.wait_dma2 semaphore(%169 : memref<!tpu.dma_semaphore, #tpu.memory_space<semaphore_mem>>) src(%166 : memref<1x128xf32, #tpu.memory_space<any>>) dst(%167 : memref<1x128xf32, #tpu.memory_space<vmem>>)
    %c9_i32_98 = arith.constant 9 : i32
    %c0_i32_99 = arith.constant 0 : i32
    %c0_i32_100 = arith.constant 0 : i32
    %170 = tpu.memref_slice %arg2[%c0_i32_99, %c0_i32_100] : memref<256x128xf32, #tpu.memory_space<any>> -> memref<1x128xf32, #tpu.memory_space<any>>
    %c0_i32_101 = arith.constant 0 : i32
    %c0_i32_102 = arith.constant 0 : i32
    %171 = tpu.memref_slice %arg3[%c0_i32_101, %c0_i32_102] : memref<16x128xf32, #tpu.memory_space<vmem>> -> memref<1x128xf32, #tpu.memory_space<vmem>>
    %172 = tpu.memref_slice %arg4[%c9_i32_98] : memref<16x!tpu.dma_semaphore, #tpu.memory_space<semaphore_mem>> -> memref<1x!tpu.dma_semaphore, #tpu.memory_space<semaphore_mem>>
    %173 = tpu.memref_squeeze %172 : memref<1x!tpu.dma_semaphore, #tpu.memory_space<semaphore_mem>> -> memref<!tpu.dma_semaphore, #tpu.memory_space<semaphore_mem>>
    tpu.wait_dma2 semaphore(%173 : memref<!tpu.dma_semaphore, #tpu.memory_space<semaphore_mem>>) src(%170 : memref<1x128xf32, #tpu.memory_space<any>>) dst(%171 : memref<1x128xf32, #tpu.memory_space<vmem>>)
    %c10_i32_103 = arith.constant 10 : i32
    %c0_i32_104 = arith.constant 0 : i32
    %c0_i32_105 = arith.constant 0 : i32
    %174 = tpu.memref_slice %arg2[%c0_i32_104, %c0_i32_105] : memref<256x128xf32, #tpu.memory_space<any>> -> memref<1x128xf32, #tpu.memory_space<any>>
    %c0_i32_106 = arith.constant 0 : i32
    %c0_i32_107 = arith.constant 0 : i32
    %175 = tpu.memref_slice %arg3[%c0_i32_106, %c0_i32_107] : memref<16x128xf32, #tpu.memory_space<vmem>> -> memref<1x128xf32, #tpu.memory_space<vmem>>
    %176 = tpu.memref_slice %arg4[%c10_i32_103] : memref<16x!tpu.dma_semaphore, #tpu.memory_space<semaphore_mem>> -> memref<1x!tpu.dma_semaphore, #tpu.memory_space<semaphore_mem>>
    %177 = tpu.memref_squeeze %176 : memref<1x!tpu.dma_semaphore, #tpu.memory_space<semaphore_mem>> -> memref<!tpu.dma_semaphore, #tpu.memory_space<semaphore_mem>>
    tpu.wait_dma2 semaphore(%177 : memref<!tpu.dma_semaphore, #tpu.memory_space<semaphore_mem>>) src(%174 : memref<1x128xf32, #tpu.memory_space<any>>) dst(%175 : memref<1x128xf32, #tpu.memory_space<vmem>>)
    %c11_i32_108 = arith.constant 11 : i32
    %c0_i32_109 = arith.constant 0 : i32
    %c0_i32_110 = arith.constant 0 : i32
    %178 = tpu.memref_slice %arg2[%c0_i32_109, %c0_i32_110] : memref<256x128xf32, #tpu.memory_space<any>> -> memref<1x128xf32, #tpu.memory_space<any>>
    %c0_i32_111 = arith.constant 0 : i32
    %c0_i32_112 = arith.constant 0 : i32
    %179 = tpu.memref_slice %arg3[%c0_i32_111, %c0_i32_112] : memref<16x128xf32, #tpu.memory_space<vmem>> -> memref<1x128xf32, #tpu.memory_space<vmem>>
    %180 = tpu.memref_slice %arg4[%c11_i32_108] : memref<16x!tpu.dma_semaphore, #tpu.memory_space<semaphore_mem>> -> memref<1x!tpu.dma_semaphore, #tpu.memory_space<semaphore_mem>>
    %181 = tpu.memref_squeeze %180 : memref<1x!tpu.dma_semaphore, #tpu.memory_space<semaphore_mem>> -> memref<!tpu.dma_semaphore, #tpu.memory_space<semaphore_mem>>
    tpu.wait_dma2 semaphore(%181 : memref<!tpu.dma_semaphore, #tpu.memory_space<semaphore_mem>>) src(%178 : memref<1x128xf32, #tpu.memory_space<any>>) dst(%179 : memref<1x128xf32, #tpu.memory_space<vmem>>)
    %c12_i32_113 = arith.constant 12 : i32
    %c0_i32_114 = arith.constant 0 : i32
    %c0_i32_115 = arith.constant 0 : i32
    %182 = tpu.memref_slice %arg2[%c0_i32_114, %c0_i32_115] : memref<256x128xf32, #tpu.memory_space<any>> -> memref<1x128xf32, #tpu.memory_space<any>>
    %c0_i32_116 = arith.constant 0 : i32
    %c0_i32_117 = arith.constant 0 : i32
    %183 = tpu.memref_slice %arg3[%c0_i32_116, %c0_i32_117] : memref<16x128xf32, #tpu.memory_space<vmem>> -> memref<1x128xf32, #tpu.memory_space<vmem>>
    %184 = tpu.memref_slice %arg4[%c12_i32_113] : memref<16x!tpu.dma_semaphore, #tpu.memory_space<semaphore_mem>> -> memref<1x!tpu.dma_semaphore, #tpu.memory_space<semaphore_mem>>
    %185 = tpu.memref_squeeze %184 : memref<1x!tpu.dma_semaphore, #tpu.memory_space<semaphore_mem>> -> memref<!tpu.dma_semaphore, #tpu.memory_space<semaphore_mem>>
    tpu.wait_dma2 semaphore(%185 : memref<!tpu.dma_semaphore, #tpu.memory_space<semaphore_mem>>) src(%182 : memref<1x128xf32, #tpu.memory_space<any>>) dst(%183 : memref<1x128xf32, #tpu.memory_space<vmem>>)
    %c13_i32_118 = arith.constant 13 : i32
    %c0_i32_119 = arith.constant 0 : i32
    %c0_i32_120 = arith.constant 0 : i32
    %186 = tpu.memref_slice %arg2[%c0_i32_119, %c0_i32_120] : memref<256x128xf32, #tpu.memory_space<any>> -> memref<1x128xf32, #tpu.memory_space<any>>
    %c0_i32_121 = arith.constant 0 : i32
    %c0_i32_122 = arith.constant 0 : i32
    %187 = tpu.memref_slice %arg3[%c0_i32_121, %c0_i32_122] : memref<16x128xf32, #tpu.memory_space<vmem>> -> memref<1x128xf32, #tpu.memory_space<vmem>>
    %188 = tpu.memref_slice %arg4[%c13_i32_118] : memref<16x!tpu.dma_semaphore, #tpu.memory_space<semaphore_mem>> -> memref<1x!tpu.dma_semaphore, #tpu.memory_space<semaphore_mem>>
    %189 = tpu.memref_squeeze %188 : memref<1x!tpu.dma_semaphore, #tpu.memory_space<semaphore_mem>> -> memref<!tpu.dma_semaphore, #tpu.memory_space<semaphore_mem>>
    tpu.wait_dma2 semaphore(%189 : memref<!tpu.dma_semaphore, #tpu.memory_space<semaphore_mem>>) src(%186 : memref<1x128xf32, #tpu.memory_space<any>>) dst(%187 : memref<1x128xf32, #tpu.memory_space<vmem>>)
    %c14_i32_123 = arith.constant 14 : i32
    %c0_i32_124 = arith.constant 0 : i32
    %c0_i32_125 = arith.constant 0 : i32
    %190 = tpu.memref_slice %arg2[%c0_i32_124, %c0_i32_125] : memref<256x128xf32, #tpu.memory_space<any>> -> memref<1x128xf32, #tpu.memory_space<any>>
    %c0_i32_126 = arith.constant 0 : i32
    %c0_i32_127 = arith.constant 0 : i32
    %191 = tpu.memref_slice %arg3[%c0_i32_126, %c0_i32_127] : memref<16x128xf32, #tpu.memory_space<vmem>> -> memref<1x128xf32, #tpu.memory_space<vmem>>
    %192 = tpu.memref_slice %arg4[%c14_i32_123] : memref<16x!tpu.dma_semaphore, #tpu.memory_space<semaphore_mem>> -> memref<1x!tpu.dma_semaphore, #tpu.memory_space<semaphore_mem>>
    %193 = tpu.memref_squeeze %192 : memref<1x!tpu.dma_semaphore, #tpu.memory_space<semaphore_mem>> -> memref<!tpu.dma_semaphore, #tpu.memory_space<semaphore_mem>>
    tpu.wait_dma2 semaphore(%193 : memref<!tpu.dma_semaphore, #tpu.memory_space<semaphore_mem>>) src(%190 : memref<1x128xf32, #tpu.memory_space<any>>) dst(%191 : memref<1x128xf32, #tpu.memory_space<vmem>>)
    %c15_i32_128 = arith.constant 15 : i32
    %c0_i32_129 = arith.constant 0 : i32
    %c0_i32_130 = arith.constant 0 : i32
    %194 = tpu.memref_slice %arg2[%c0_i32_129, %c0_i32_130] : memref<256x128xf32, #tpu.memory_space<any>> -> memref<1x128xf32, #tpu.memory_space<any>>
    %c0_i32_131 = arith.constant 0 : i32
    %c0_i32_132 = arith.constant 0 : i32
    %195 = tpu.memref_slice %arg3[%c0_i32_131, %c0_i32_132] : memref<16x128xf32, #tpu.memory_space<vmem>> -> memref<1x128xf32, #tpu.memory_space<vmem>>
    %196 = tpu.memref_slice %arg4[%c15_i32_128] : memref<16x!tpu.dma_semaphore, #tpu.memory_space<semaphore_mem>> -> memref<1x!tpu.dma_semaphore, #tpu.memory_space<semaphore_mem>>
    %197 = tpu.memref_squeeze %196 : memref<1x!tpu.dma_semaphore, #tpu.memory_space<semaphore_mem>> -> memref<!tpu.dma_semaphore, #tpu.memory_space<semaphore_mem>>
    tpu.wait_dma2 semaphore(%197 : memref<!tpu.dma_semaphore, #tpu.memory_space<semaphore_mem>>) src(%194 : memref<1x128xf32, #tpu.memory_space<any>>) dst(%195 : memref<1x128xf32, #tpu.memory_space<vmem>>)
    return
  }
  func.func @transform_1(%arg0: i32, %arg1: memref<16xi32, #tpu.memory_space<smem>>) -> (i32, i32) {
    %c0_i32 = arith.constant 0 : i32
    %c0_i32_0 = arith.constant 0 : i32
    return %arg0, %c0_i32 : i32, i32
  }
}

</mosaic_0001>

<llo_original>
// kernel: tpu_custom_call.1
$region0: #{tpu_custom_call.1}
  #allocation0 [shape = 'u32[]', space=smem, size = 0x4, offset = 0x4, fixed_abs, tag = 'smem constant byte address 0x4 - core index']
  #allocation1 [shape = 'u32[144,128]{1,0:T(1,128)}', space=vmem, size = 0x12000, scoped, tag = 'internal scratch']
  #allocation2 [shape = 's32[16]{0}', space=sflag, size = 0x40, scoped, tag = 'scratch operand']
  #allocation3 [shape = 's32[1]{0}', space=sflag, size = 0x4, scoped, tag = 'scoped memory for tpu_custom_call.1']
  #allocation4 [shape = 'u8[512]{0}', space=smem, size = 0x200, scoped, tag = 'prefetched SMEM operand 0']
  #allocation7 [shape = 's32[]', space=sflag, size = 0x4, offset = 0, fixed_abs, tag = 'sflag constant byte address 0x0 - dummy sync flag']
  #allocation8 [shape = 's32[]', space=sflag, size = 0x4, offset = 0, fixed_abs, tag = 'sflag constant byte address 0x0 - dummy sync flag']
  #allocation9 [shape = 'u32[]', space=smem, size = 0x4, offset = 0x44, fixed_abs, tag = 'smem constant byte address 0x44 - assertion arg 0']
  #allocation10 [shape = 'u32[]', space=smem, size = 0x4, offset = 0x48, fixed_abs, tag = 'smem constant byte address 0x48 - assertion arg 1']
  #allocation11 [shape = 's32[]', space=sflag, size = 0x4, offset = 0, fixed_abs, tag = 'sflag constant byte address 0x0 - dummy sync flag']
  #allocation12 [shape = 's32[]', space=sflag, size = 0x4, offset = 0, fixed_abs, tag = 'sflag constant byte address 0x0 - dummy sync flag']
  #allocation13 [shape = 's32[]', space=sflag, size = 0x4, offset = 0, fixed_abs, tag = 'sflag constant byte address 0x0 - dummy sync flag']
  #allocation14 [shape = 's32[]', space=sflag, size = 0x4, offset = 0, fixed_abs, tag = 'sflag constant byte address 0x0 - dummy sync flag']
  #allocation15 [shape = 's32[]', space=sflag, size = 0x4, offset = 0, fixed_abs, tag = 'sflag constant byte address 0x0 - dummy sync flag']
  #allocation16 [shape = 's32[]', space=sflag, size = 0x4, offset = 0, fixed_abs, tag = 'sflag constant byte address 0x0 - dummy sync flag']
  #allocation17 [shape = 's32[]', space=sflag, size = 0x4, offset = 0, fixed_abs, tag = 'sflag constant byte address 0x0 - dummy sync flag']
  #allocation18 [shape = 's32[]', space=sflag, size = 0x4, offset = 0, fixed_abs, tag = 'sflag constant byte address 0x0 - dummy sync flag']
  #allocation19 [shape = 's32[]', space=sflag, size = 0x4, offset = 0, fixed_abs, tag = 'sflag constant byte address 0x0 - dummy sync flag']
  #allocation20 [shape = 's32[]', space=sflag, size = 0x4, offset = 0, fixed_abs, tag = 'sflag constant byte address 0x0 - dummy sync flag']
  #allocation21 [shape = 's32[]', space=sflag, size = 0x4, offset = 0, fixed_abs, tag = 'sflag constant byte address 0x0 - dummy sync flag']
  #allocation22 [shape = 's32[]', space=sflag, size = 0x4, offset = 0, fixed_abs, tag = 'sflag constant byte address 0x0 - dummy sync flag']
  #allocation23 [shape = 's32[]', space=sflag, size = 0x4, offset = 0, fixed_abs, tag = 'sflag constant byte address 0x0 - dummy sync flag']
  #allocation24 [shape = 's32[]', space=sflag, size = 0x4, offset = 0, fixed_abs, tag = 'sflag constant byte address 0x0 - dummy sync flag']
  #allocation25 [shape = 's32[]', space=sflag, size = 0x4, offset = 0, fixed_abs, tag = 'sflag constant byte address 0x0 - dummy sync flag']
  #allocation26 [shape = 's32[]', space=sflag, size = 0x4, offset = 0, fixed_abs, tag = 'sflag constant byte address 0x0 - dummy sync flag']
  #allocation27 [shape = 's32[]', space=sflag, size = 0x4, offset = 0, fixed_abs, tag = 'sflag constant byte address 0x0 - dummy sync flag']
  #allocation28 [shape = 's32[]', space=sflag, size = 0x4, offset = 0, fixed_abs, tag = 'sflag constant byte address 0x0 - dummy sync flag']
  #allocation29 [shape = 's32[]', space=sflag, size = 0x4, offset = 0, fixed_abs, tag = 'sflag constant byte address 0x0 - dummy sync flag']
  #allocation30 [shape = 's32[]', space=sflag, size = 0x4, offset = 0, fixed_abs, tag = 'sflag constant byte address 0x0 - dummy sync flag']
  #allocation31 [shape = 's32[]', space=sflag, size = 0x4, offset = 0, fixed_abs, tag = 'sflag constant byte address 0x0 - dummy sync flag']
  #allocation32 [shape = 's32[]', space=sflag, size = 0x4, offset = 0, fixed_abs, tag = 'sflag constant byte address 0x0 - dummy sync flag']
  #allocation33 [shape = 's32[]', space=sflag, size = 0x4, offset = 0, fixed_abs, tag = 'sflag constant byte address 0x0 - dummy sync flag']
  #allocation34 [shape = 's32[]', space=sflag, size = 0x4, offset = 0, fixed_abs, tag = 'sflag constant byte address 0x0 - dummy sync flag']
  #allocation35 [shape = 's32[]', space=sflag, size = 0x4, offset = 0, fixed_abs, tag = 'sflag constant byte address 0x0 - dummy sync flag']
  #allocation36 [shape = 's32[]', space=sflag, size = 0x4, offset = 0, fixed_abs, tag = 'sflag constant byte address 0x0 - dummy sync flag']
  #allocation37 [shape = 's32[]', space=sflag, size = 0x4, offset = 0, fixed_abs, tag = 'sflag constant byte address 0x0 - dummy sync flag']
  #allocation38 [shape = 's32[]', space=sflag, size = 0x4, offset = 0, fixed_abs, tag = 'sflag constant byte address 0x0 - dummy sync flag']
  #allocation39 [shape = 's32[]', space=sflag, size = 0x4, offset = 0, fixed_abs, tag = 'sflag constant byte address 0x0 - dummy sync flag']
  #allocation40 [shape = 's32[]', space=sflag, size = 0x4, offset = 0, fixed_abs, tag = 'sflag constant byte address 0x0 - dummy sync flag']
  %s0 = inlined_call_operand.hbm [shape: s32[16], index: 0, kind: input, shape index: {}]
  %s1 = inlined_call_operand.hbm [shape: f32[256,128], index: 1, kind: input, shape index: {}]
  %s2 = inlined_call_operand.hbm [shape: f32[16,128], index: 2, kind: output, shape index: {}]
  %s3 = sld [smem:[#allocation0]]
  $region74: #{tpu_custom_call.1} parent=0
    _
  %s5 = ssub.s32 1, %s3
  %s6 = scalar_select 0, %s5, %s3
  %8 = dma.hbm_to_smem %s0, 16, [#allocation4], [#allocation3]
  %9 = dma.done [#allocation3], 16
  %10 = sfence
  $region1: #{tpu_custom_call.1} parent=0
    #allocation5 [shape = 'u8[8192]{0}', space=vmem, size = 0x2000, scoped, tag = 'output window, operand 0, single buffered']
    #allocation6 [shape = 's32[1]{0}', space=sflag, size = 0x4, scoped, tag = 'scoped memory for tpu_custom_call.1']
    %11 = vsyncpa [#allocation6], 0
    %s12 = smul.u32 0, 16
    %s13 = sadd.s32 %s12, 0
    %s14 = sld [smem:[#allocation4 + %s13]]
    %s15 = smul.addr %s14, 16
    %s16 = scalar_lea.hbm %s1, %s15
    // Predicated region
    $region2: #{tpu_custom_call.1} parent=1 // pred_check
      _
    $region3: #{tpu_custom_call.1} parent=1 // pred_check_branch
      %18 = sbr.rel target = $region5
    $region4: #{tpu_custom_call.1} parent=1 // pred_region
      %19 = sst [smem:[#allocation9]] [#allocation8]
      %20 = sst [smem:[#allocation10]] [#allocation7]
    $region5: #{tpu_custom_call.1} parent=1 // pred_fallthru
      _
    %22 = shalt.err (0)
    %s24 = sshll.u32 [#allocation5], 4
    %s25 = int_to_ptr.vmem [resolvable:$true] %s24
    %27 = dma.hbm_to_vmem [thread:$0]  %s16, 16, %s25, [#allocation2]
    %s28 = sadd.s32 0, 1
    %s29 = sadd.s32 %s12, %s28
    %s30 = sld [smem:[#allocation4 + %s29]]
    %s31 = smul.addr %s30, 16
    %s32 = scalar_lea.hbm %s1, %s31
    %s33 = scalar_lea.vmem [#allocation5], %s28
    %s34 = scalar_lea.sflag [#allocation2], 1
    // Predicated region
    $region6: #{tpu_custom_call.1} parent=1 // pred_check
      _
    $region7: #{tpu_custom_call.1} parent=1 // pred_check_branch
      %36 = sbr.rel target = $region9
    $region8: #{tpu_custom_call.1} parent=1 // pred_region
      %37 = sst [smem:[#allocation9]] [#allocation12]
      %38 = sst [smem:[#allocation10]] [#allocation11]
    $region9: #{tpu_custom_call.1} parent=1 // pred_fallthru
      _
    %40 = shalt.err (0)
    %s42 = sshll.u32 %s33, 4
    %s43 = int_to_ptr.vmem [resolvable:$true] %s42
    %45 = dma.hbm_to_vmem [thread:$0]  %s32, 16, %s43, %s34
    %s46 = sadd.s32 0, 2
    %s47 = sadd.s32 %s12, %s46
    %s48 = sld [smem:[#allocation4 + %s47]]
    %s49 = smul.addr %s48, 16
    %s50 = scalar_lea.hbm %s1, %s49
    %s51 = scalar_lea.vmem [#allocation5], %s46
    %s52 = scalar_lea.sflag [#allocation2], 2
    // Predicated region
    $region10: #{tpu_custom_call.1} parent=1 // pred_check
      _
    $region11: #{tpu_custom_call.1} parent=1 // pred_check_branch
      %54 = sbr.rel target = $region13
    $region12: #{tpu_custom_call.1} parent=1 // pred_region
      %55 = sst [smem:[#allocation9]] [#allocation14]
      %56 = sst [smem:[#allocation10]] [#allocation13]
    $region13: #{tpu_custom_call.1} parent=1 // pred_fallthru
      _
    %58 = shalt.err (0)
    %s60 = sshll.u32 %s51, 4
    %s61 = int_to_ptr.vmem [resolvable:$true] %s60
    %63 = dma.hbm_to_vmem [thread:$0]  %s50, 16, %s61, %s52
    %s64 = sadd.s32 0, 3
    %s65 = sadd.s32 %s12, %s64
    %s66 = sld [smem:[#allocation4 + %s65]]
    %s67 = smul.addr %s66, 16
    %s68 = scalar_lea.hbm %s1, %s67
    %s69 = scalar_lea.vmem [#allocation5], %s64
    %s70 = scalar_lea.sflag [#allocation2], 3
    // Predicated region
    $region14: #{tpu_custom_call.1} parent=1 // pred_check
      _
    $region15: #{tpu_custom_call.1} parent=1 // pred_check_branch
      %72 = sbr.rel target = $region17
    $region16: #{tpu_custom_call.1} parent=1 // pred_region
      %73 = sst [smem:[#allocation9]] [#allocation16]
      %74 = sst [smem:[#allocation10]] [#allocation15]
    $region17: #{tpu_custom_call.1} parent=1 // pred_fallthru
      _
    %76 = shalt.err (0)
    %s78 = sshll.u32 %s69, 4
    %s79 = int_to_ptr.vmem [resolvable:$true] %s78
    %81 = dma.hbm_to_vmem [thread:$0]  %s68, 16, %s79, %s70
    %s82 = sadd.s32 0, 4
    %s83 = sadd.s32 %s12, %s82
    %s84 = sld [smem:[#allocation4 + %s83]]
    %s85 = smul.addr %s84, 16
    %s86 = scalar_lea.hbm %s1, %s85
    %s87 = scalar_lea.vmem [#allocation5], %s82
    %s88 = scalar_lea.sflag [#allocation2], 4
    // Predicated region
    $region18: #{tpu_custom_call.1} parent=1 // pred_check
      _
    $region19: #{tpu_custom_call.1} parent=1 // pred_check_branch
      %90 = sbr.rel target = $region21
    $region20: #{tpu_custom_call.1} parent=1 // pred_region
      %91 = sst [smem:[#allocation9]] [#allocation18]
      %92 = sst [smem:[#allocation10]] [#allocation17]
    $region21: #{tpu_custom_call.1} parent=1 // pred_fallthru
      _
    %94 = shalt.err (0)
    %s96 = sshll.u32 %s87, 4
    %s97 = int_to_ptr.vmem [resolvable:$true] %s96
    %99 = dma.hbm_to_vmem [thread:$0]  %s86, 16, %s97, %s88
    %s100 = sadd.s32 0, 5
    %s101 = sadd.s32 %s12, %s100
    %s102 = sld [smem:[#allocation4 + %s101]]
    %s103 = smul.addr %s102, 16
    %s104 = scalar_lea.hbm %s1, %s103
    %s105 = scalar_lea.vmem [#allocation5], %s100
    %s106 = scalar_lea.sflag [#allocation2], 5
    // Predicated region
    $region22: #{tpu_custom_call.1} parent=1 // pred_check
      _
    $region23: #{tpu_custom_call.1} parent=1 // pred_check_branch
      %108 = sbr.rel target = $region25
    $region24: #{tpu_custom_call.1} parent=1 // pred_region
      %109 = sst [smem:[#allocation9]] [#allocation20]
      %110 = sst [smem:[#allocation10]] [#allocation19]
    $region25: #{tpu_custom_call.1} parent=1 // pred_fallthru
      _
    %112 = shalt.err (0)
    %s114 = sshll.u32 %s105, 4
    %s115 = int_to_ptr.vmem [resolvable:$true] %s114
    %117 = dma.hbm_to_vmem [thread:$0]  %s104, 16, %s115, %s106
    %s118 = sadd.s32 0, 6
    %s119 = sadd.s32 %s12, %s118
    %s120 = sld [smem:[#allocation4 + %s119]]
    %s121 = smul.addr %s120, 16
    %s122 = scalar_lea.hbm %s1, %s121
    %s123 = scalar_lea.vmem [#allocation5], %s118
    %s124 = scalar_lea.sflag [#allocation2], 6
    // Predicated region
    $region26: #{tpu_custom_call.1} parent=1 // pred_check
      _
    $region27: #{tpu_custom_call.1} parent=1 // pred_check_branch
      %126 = sbr.rel target = $region29
    $region28: #{tpu_custom_call.1} parent=1 // pred_region
      %127 = sst [smem:[#allocation9]] [#allocation22]
      %128 = sst [smem:[#allocation10]] [#allocation21]
    $region29: #{tpu_custom_call.1} parent=1 // pred_fallthru
      _
    %130 = shalt.err (0)
    %s132 = sshll.u32 %s123, 4
    %s133 = int_to_ptr.vmem [resolvable:$true] %s132
    %135 = dma.hbm_to_vmem [thread:$0]  %s122, 16, %s133, %s124
    %s136 = sadd.s32 0, 7
    %s137 = sadd.s32 %s12, %s136
    %s138 = sld [smem:[#allocation4 + %s137]]
    %s139 = smul.addr %s138, 16
    %s140 = scalar_lea.hbm %s1, %s139
    %s141 = scalar_lea.vmem [#allocation5], %s136
    %s142 = scalar_lea.sflag [#allocation2], 7
    // Predicated region
    $region30: #{tpu_custom_call.1} parent=1 // pred_check
      _
    $region31: #{tpu_custom_call.1} parent=1 // pred_check_branch
      %144 = sbr.rel target = $region33
    $region32: #{tpu_custom_call.1} parent=1 // pred_region
      %145 = sst [smem:[#allocation9]] [#allocation24]
      %146 = sst [smem:[#allocation10]] [#allocation23]
    $region33: #{tpu_custom_call.1} parent=1 // pred_fallthru
      _
    %148 = shalt.err (0)
    %s150 = sshll.u32 %s141, 4
    %s151 = int_to_ptr.vmem [resolvable:$true] %s150
    %153 = dma.hbm_to_vmem [thread:$0]  %s140, 16, %s151, %s142
    %s154 = sadd.s32 0, 8
    %s155 = sadd.s32 %s12, %s154
    %s156 = sld [smem:[#allocation4 + %s155]]
    %s157 = smul.addr %s156, 16
    %s158 = scalar_lea.hbm %s1, %s157
    %s159 = scalar_lea.vmem [#allocation5], %s154
    %s160 = scalar_lea.sflag [#allocation2], 8
    // Predicated region
    $region34: #{tpu_custom_call.1} parent=1 // pred_check
      _
    $region35: #{tpu_custom_call.1} parent=1 // pred_check_branch
      %162 = sbr.rel target = $region37
    $region36: #{tpu_custom_call.1} parent=1 // pred_region
      %163 = sst [smem:[#allocation9]] [#allocation26]
      %164 = sst [smem:[#allocation10]] [#allocation25]
    $region37: #{tpu_custom_call.1} parent=1 // pred_fallthru
      _
    %166 = shalt.err (0)
    %s168 = sshll.u32 %s159, 4
    %s169 = int_to_ptr.vmem [resolvable:$true] %s168
    %171 = dma.hbm_to_vmem [thread:$0]  %s158, 16, %s169, %s160
    %s172 = sadd.s32 0, 9
    %s173 = sadd.s32 %s12, %s172
    %s174 = sld [smem:[#allocation4 + %s173]]
    %s175 = smul.addr %s174, 16
    %s176 = scalar_lea.hbm %s1, %s175
    %s177 = scalar_lea.vmem [#allocation5], %s172
    %s178 = scalar_lea.sflag [#allocation2], 9
    // Predicated region
    $region38: #{tpu_custom_call.1} parent=1 // pred_check
      _
    $region39: #{tpu_custom_call.1} parent=1 // pred_check_branch
      %180 = sbr.rel target = $region41
    $region40: #{tpu_custom_call.1} parent=1 // pred_region
      %181 = sst [smem:[#allocation9]] [#allocation28]
      %182 = sst [smem:[#allocation10]] [#allocation27]
    $region41: #{tpu_custom_call.1} parent=1 // pred_fallthru
      _
    %184 = shalt.err (0)
    %s186 = sshll.u32 %s177, 4
    %s187 = int_to_ptr.vmem [resolvable:$true] %s186
    %189 = dma.hbm_to_vmem [thread:$0]  %s176, 16, %s187, %s178
    %s190 = sadd.s32 0, 10
    %s191 = sadd.s32 %s12, %s190
    %s192 = sld [smem:[#allocation4 + %s191]]
    %s193 = smul.addr %s192, 16
    %s194 = scalar_lea.hbm %s1, %s193
    %s195 = scalar_lea.vmem [#allocation5], %s190
    %s196 = scalar_lea.sflag [#allocation2], 10
    // Predicated region
    $region42: #{tpu_custom_call.1} parent=1 // pred_check
      _
    $region43: #{tpu_custom_call.1} parent=1 // pred_check_branch
      %198 = sbr.rel target = $region45
    $region44: #{tpu_custom_call.1} parent=1 // pred_region
      %199 = sst [smem:[#allocation9]] [#allocation30]
      %200 = sst [smem:[#allocation10]] [#allocation29]
    $region45: #{tpu_custom_call.1} parent=1 // pred_fallthru
      _
    %202 = shalt.err (0)
    %s204 = sshll.u32 %s195, 4
    %s205 = int_to_ptr.vmem [resolvable:$true] %s204
    %207 = dma.hbm_to_vmem [thread:$0]  %s194, 16, %s205, %s196
    %s208 = sadd.s32 0, 11
    %s209 = sadd.s32 %s12, %s208
    %s210 = sld [smem:[#allocation4 + %s209]]
    %s211 = smul.addr %s210, 16
    %s212 = scalar_lea.hbm %s1, %s211
    %s213 = scalar_lea.vmem [#allocation5], %s208
    %s214 = scalar_lea.sflag [#allocation2], 11
    // Predicated region
    $region46: #{tpu_custom_call.1} parent=1 // pred_check
      _
    $region47: #{tpu_custom_call.1} parent=1 // pred_check_branch
      %216 = sbr.rel target = $region49
    $region48: #{tpu_custom_call.1} parent=1 // pred_region
      %217 = sst [smem:[#allocation9]] [#allocation32]
      %218 = sst [smem:[#allocation10]] [#allocation31]
    $region49: #{tpu_custom_call.1} parent=1 // pred_fallthru
      _
    %220 = shalt.err (0)
    %s222 = sshll.u32 %s213, 4
    %s223 = int_to_ptr.vmem [resolvable:$true] %s222
    %225 = dma.hbm_to_vmem [thread:$0]  %s212, 16, %s223, %s214
    %s226 = sadd.s32 0, 12
    %s227 = sadd.s32 %s12, %s226
    %s228 = sld [smem:[#allocation4 + %s227]]
    %s229 = smul.addr %s228, 16
    %s230 = scalar_lea.hbm %s1, %s229
    %s231 = scalar_lea.vmem [#allocation5], %s226
    %s232 = scalar_lea.sflag [#allocation2], 12
    // Predicated region
    $region50: #{tpu_custom_call.1} parent=1 // pred_check
      _
    $region51: #{tpu_custom_call.1} parent=1 // pred_check_branch
      %234 = sbr.rel target = $region53
    $region52: #{tpu_custom_call.1} parent=1 // pred_region
      %235 = sst [smem:[#allocation9]] [#allocation34]
      %236 = sst [smem:[#allocation10]] [#allocation33]
    $region53: #{tpu_custom_call.1} parent=1 // pred_fallthru
      _
    %238 = shalt.err (0)
    %s240 = sshll.u32 %s231, 4
    %s241 = int_to_ptr.vmem [resolvable:$true] %s240
    %243 = dma.hbm_to_vmem [thread:$0]  %s230, 16, %s241, %s232
    %s244 = sadd.s32 0, 13
    %s245 = sadd.s32 %s12, %s244
    %s246 = sld [smem:[#allocation4 + %s245]]
    %s247 = smul.addr %s246, 16
    %s248 = scalar_lea.hbm %s1, %s247
    %s249 = scalar_lea.vmem [#allocation5], %s244
    %s250 = scalar_lea.sflag [#allocation2], 13
    // Predicated region
    $region54: #{tpu_custom_call.1} parent=1 // pred_check
      _
    $region55: #{tpu_custom_call.1} parent=1 // pred_check_branch
      %252 = sbr.rel target = $region57
    $region56: #{tpu_custom_call.1} parent=1 // pred_region
      %253 = sst [smem:[#allocation9]] [#allocation36]
      %254 = sst [smem:[#allocation10]] [#allocation35]
    $region57: #{tpu_custom_call.1} parent=1 // pred_fallthru
      _
    %256 = shalt.err (0)
    %s258 = sshll.u32 %s249, 4
    %s259 = int_to_ptr.vmem [resolvable:$true] %s258
    %261 = dma.hbm_to_vmem [thread:$0]  %s248, 16, %s259, %s250
    %s262 = sadd.s32 0, 14
    %s263 = sadd.s32 %s12, %s262
    %s264 = sld [smem:[#allocation4 + %s263]]
    %s265 = smul.addr %s264, 16
    %s266 = scalar_lea.hbm %s1, %s265
    %s267 = scalar_lea.vmem [#allocation5], %s262
    %s268 = scalar_lea.sflag [#allocation2], 14
    // Predicated region
    $region58: #{tpu_custom_call.1} parent=1 // pred_check
      _
    $region59: #{tpu_custom_call.1} parent=1 // pred_check_branch
      %270 = sbr.rel target = $region61
    $region60: #{tpu_custom_call.1} parent=1 // pred_region
      %271 = sst [smem:[#allocation9]] [#allocation38]
      %272 = sst [smem:[#allocation10]] [#allocation37]
    $region61: #{tpu_custom_call.1} parent=1 // pred_fallthru
      _
    %274 = shalt.err (0)
    %s276 = sshll.u32 %s267, 4
    %s277 = int_to_ptr.vmem [resolvable:$true] %s276
    %279 = dma.hbm_to_vmem [thread:$0]  %s266, 16, %s277, %s268
    %s280 = sadd.s32 0, 15
    %s281 = sadd.s32 %s12, %s280
    %s282 = sld [smem:[#allocation4 + %s281]]
    %s283 = smul.addr %s282, 16
    %s284 = scalar_lea.hbm %s1, %s283
    %s285 = scalar_lea.vmem [#allocation5], %s280
    %s286 = scalar_lea.sflag [#allocation2], 15
    // Predicated region
    $region62: #{tpu_custom_call.1} parent=1 // pred_check
      _
    $region63: #{tpu_custom_call.1} parent=1 // pred_check_branch
      %288 = sbr.rel target = $region65
    $region64: #{tpu_custom_call.1} parent=1 // pred_region
      %289 = sst [smem:[#allocation9]] [#allocation40]
      %290 = sst [smem:[#allocation10]] [#allocation39]
    $region65: #{tpu_custom_call.1} parent=1 // pred_fallthru
      _
    %292 = shalt.err (0)
    %s294 = sshll.u32 %s285, 4
    %s295 = int_to_ptr.vmem [resolvable:$true] %s294
    %297 = dma.hbm_to_vmem [thread:$0]  %s284, 16, %s295, %s286
    %s298 = smul.u32 1, 1
    %s299 = sshll.u32 %s298, 4
    %300 = dma.done [#allocation2], %s299
    %s301 = sshll.u32 %s298, 4
    %302 = dma.done %s34, %s301
    %s303 = sshll.u32 %s298, 4
    %304 = dma.done %s52, %s303
    %s305 = sshll.u32 %s298, 4
    %306 = dma.done %s70, %s305
    %s307 = sshll.u32 %s298, 4
    %308 = dma.done %s88, %s307
    %s309 = sshll.u32 %s298, 4
    %310 = dma.done %s106, %s309
    %s311 = sshll.u32 %s298, 4
    %312 = dma.done %s124, %s311
    %s313 = sshll.u32 %s298, 4
    %314 = dma.done %s142, %s313
    %s315 = sshll.u32 %s298, 4
    %316 = dma.done %s160, %s315
    %s317 = sshll.u32 %s298, 4
    %318 = dma.done %s178, %s317
    %s319 = sshll.u32 %s298, 4
    %320 = dma.done %s196, %s319
    %s321 = sshll.u32 %s298, 4
    %322 = dma.done %s214, %s321
    %s323 = sshll.u32 %s298, 4
    %324 = dma.done %s232, %s323
    %s325 = sshll.u32 %s298, 4
    %326 = dma.done %s250, %s325
    %s327 = sshll.u32 %s298, 4
    %328 = dma.done %s268, %s327
    %s329 = sshll.u32 %s298, 4
    %330 = dma.done %s286, %s329
    // Predicated region
    $region66: #{tpu_custom_call.1} parent=1 // pred_check
      _
    $region67: #{tpu_custom_call.1} parent=1 // pred_check_branch
      %332 = sbr.rel (0) target = $region69
    $region68: #{tpu_custom_call.1} parent=1 // pred_region
      %s334 = ssub.s32 256, 256
      %335 = vsyncadd [#allocation6], %s334
      %s336 = sshll.u32 [#allocation5], 4
      %s337 = int_to_ptr.vmem [resolvable:$true] %s336
      %342 = dma.vmem_to_hbm [thread:$0]  %s337, 256, %s2, [#allocation6], 128, 128, 8
    $region69: #{tpu_custom_call.1} parent=1 // pred_fallthru
      _
    // Predicated region
    $region70: #{tpu_custom_call.1} parent=1 // pred_check
      _
    $region71: #{tpu_custom_call.1} parent=1 // pred_check_branch
      %344 = sbr.rel (0) target = $region73
    $region72: #{tpu_custom_call.1} parent=1 // pred_region
      %345 = dma.done [#allocation6], 256
    $region73: #{tpu_custom_call.1} parent=1 // pred_fallthru
      _
    %346 = vsyncpa [#allocation6], 1
  %347 = vsyncmov [#allocation2]
  %s348 = vpop.sfrf %347
  %p349 = scmp.eq.s32.totalorder %s348, 0
  %p350 = pneg %p349
  %352 = shalt.err (%p350)
  %s353 = scalar_lea.sflag [#allocation2], 1
  %354 = vsyncmov %s353
  %s355 = vpop.sfrf %354
  %p356 = scmp.eq.s32.totalorder %s355, 0
  %p357 = pneg %p356
  %359 = shalt.err (%p357)
  %s360 = scalar_lea.sflag [#allocation2], 2
  %361 = vsyncmov %s360
  %s362 = vpop.sfrf %361
  %p363 = scmp.eq.s32.totalorder %s362, 0
  %p364 = pneg %p363
  %366 = shalt.err (%p364)
  %s367 = scalar_lea.sflag [#allocation2], 3
  %368 = vsyncmov %s367
  %s369 = vpop.sfrf %368
  %p370 = scmp.eq.s32.totalorder %s369, 0
  %p371 = pneg %p370
  %373 = shalt.err (%p371)
  %s374 = scalar_lea.sflag [#allocation2], 4
  %375 = vsyncmov %s374
  %s376 = vpop.sfrf %375
  %p377 = scmp.eq.s32.totalorder %s376, 0
  %p378 = pneg %p377
  %380 = shalt.err (%p378)
  %s381 = scalar_lea.sflag [#allocation2], 5
  %382 = vsyncmov %s381
  %s383 = vpop.sfrf %382
  %p384 = scmp.eq.s32.totalorder %s383, 0
  %p385 = pneg %p384
  %387 = shalt.err (%p385)
  %s388 = scalar_lea.sflag [#allocation2], 6
  %389 = vsyncmov %s388
  %s390 = vpop.sfrf %389
  %p391 = scmp.eq.s32.totalorder %s390, 0
  %p392 = pneg %p391
  %394 = shalt.err (%p392)
  %s395 = scalar_lea.sflag [#allocation2], 7
  %396 = vsyncmov %s395
  %s397 = vpop.sfrf %396
  %p398 = scmp.eq.s32.totalorder %s397, 0
  %p399 = pneg %p398
  %401 = shalt.err (%p399)
  %s402 = scalar_lea.sflag [#allocation2], 8
  %403 = vsyncmov %s402
  %s404 = vpop.sfrf %403
  %p405 = scmp.eq.s32.totalorder %s404, 0
  %p406 = pneg %p405
  %408 = shalt.err (%p406)
  %s409 = scalar_lea.sflag [#allocation2], 9
  %410 = vsyncmov %s409
  %s411 = vpop.sfrf %410
  %p412 = scmp.eq.s32.totalorder %s411, 0
  %p413 = pneg %p412
  %415 = shalt.err (%p413)
  %s416 = scalar_lea.sflag [#allocation2], 10
  %417 = vsyncmov %s416
  %s418 = vpop.sfrf %417
  %p419 = scmp.eq.s32.totalorder %s418, 0
  %p420 = pneg %p419
  %422 = shalt.err (%p420)
  %s423 = scalar_lea.sflag [#allocation2], 11
  %424 = vsyncmov %s423
  %s425 = vpop.sfrf %424
  %p426 = scmp.eq.s32.totalorder %s425, 0
  %p427 = pneg %p426
  %429 = shalt.err (%p427)
  %s430 = scalar_lea.sflag [#allocation2], 12
  %431 = vsyncmov %s430
  %s432 = vpop.sfrf %431
  %p433 = scmp.eq.s32.totalorder %s432, 0
  %p434 = pneg %p433
  %436 = shalt.err (%p434)
  %s437 = scalar_lea.sflag [#allocation2], 13
  %438 = vsyncmov %s437
  %s439 = vpop.sfrf %438
  %p440 = scmp.eq.s32.totalorder %s439, 0
  %p441 = pneg %p440
  %443 = shalt.err (%p441)
  %s444 = scalar_lea.sflag [#allocation2], 14
  %445 = vsyncmov %s444
  %s446 = vpop.sfrf %445
  %p447 = scmp.eq.s32.totalorder %s446, 0
  %p448 = pneg %p447
  %450 = shalt.err (%p448)
  %s451 = scalar_lea.sflag [#allocation2], 15
  %452 = vsyncmov %s451
  %s453 = vpop.sfrf %452
  %p454 = scmp.eq.s32.totalorder %s453, 0
  %p455 = pneg %p454
  %457 = shalt.err (%p455)

</llo_original>
